<compile_context>
chip_gen: v7x
topology: tpu7x:2x2x1
jax: 0.10.0
libtpu: 0.0.40
codegen_flags: <defaults>
</compile_context>

<pallas_src>
import numpy as np
import jax
import jax.numpy as jnp
from jax.experimental import pallas as pl
from jax.experimental.pallas import tpu as pltpu

F_IN = 1024     # Linear in_features  (fixed by the module)
C_OUT = 2       # Linear out_features (binary head)
_TM_BUCKETS = (16, 256, 2048)


def _default_tm(batch):
    # Largest bucket that still yields >= 2 grid steps (megacore on v7x),
    # falling back to the smallest bucket for tiny batches. Bucketing keeps
    # the set of compiled kernel variants small as serving batch size varies.
    for t in reversed(_TM_BUCKETS):
        if batch >= 2 * t:
            return t
    return _TM_BUCKETS[0]


def _head_kernel(x_ref, w_ref, b_ref, o_ref):
    # x_ref: (TM, 1024) native dtype; w_ref: (1024, 2) same dtype;
    # b_ref: (1, 2) f32; o_ref: (TM, 2) f32.
    logits = jnp.dot(x_ref[...], w_ref[...],
                     preferred_element_type=jnp.float32) + b_ref[...]
    # softmax over dim=1 with 2 classes == sigmoid of the logit difference
    # (numerically identical to the stable max/exp/sum softmax).
    d = logits[:, 1:2] - logits[:, 0:1]                    # (TM, 1)
    p1 = pl.reciprocal(1.0 + jnp.exp(-d), approx=True)     # sigmoid(d) on EUP
    # TODO(synk): a class-major (2, TM) output block would make these stores
    # lane-dense; kept row-major to match the module's [B, 2] output layout
    # (cost is hidden under the per-tile input DMA).
    o_ref[:, 0:1] = 1.0 - p1
    o_ref[:, 1:2] = p1


@jax.jit
def swin_binary_head(x, w_t, b):
    """x: [B, 1024] (f32 or bf16); w_t: [1024, 2]; b: [2] or [1, 2].
    Returns [B, 2] softmax probabilities in f32."""
    B, F = x.shape
    assert F == F_IN, f"expected {F_IN} input features, got {F}"
    tm = _default_tm(B)

    w_t = w_t.astype(x.dtype)          # tiny (<=8 KiB); keeps the dot homogeneous
    b = jnp.asarray(b, jnp.float32).reshape(1, C_OUT)

    itemsize = x.dtype.itemsize
    grid = (pl.cdiv(B, tm),)           # partial last block handled by Pallas

    # Double-buffered x tile + lane-padded output/W buffers + headroom.
    vmem_bytes = (2 * tm * F_IN * itemsize       # x tiles (double-buffered)
                  + 2 * tm * 128 * 4             # (TM, 2) out, lane-padded
                  + 2 * F_IN * 128 * itemsize    # W, lane-padded
                  + (8 << 20))                   # headroom / internal scratch
    vmem_bytes = int(min(vmem_bytes, 48 << 20))

    cost = pl.CostEstimate(
        flops=2 * B * F_IN * C_OUT,
        transcendentals=B,
        bytes_accessed=B * F_IN * itemsize + F_IN * C_OUT * itemsize
        + B * C_OUT * 4,
    )

    return pl.pallas_call(
        _head_kernel,
        out_shape=jax.ShapeDtypeStruct((B, C_OUT), jnp.float32),
        grid_spec=pltpu.PrefetchScalarGridSpec(
            num_scalar_prefetch=0,
            grid=grid,
            in_specs=[
                pl.BlockSpec((tm, F_IN), lambda i: (i, 0)),      # x tile
                pl.BlockSpec((F_IN, C_OUT), lambda i: (0, 0)),   # W (resident)
                pl.BlockSpec((1, C_OUT), lambda i: (0, 0)),      # b (resident)
            ],
            out_specs=pl.BlockSpec((tm, C_OUT), lambda i: (i, 0)),
        ),
        compiler_params=pltpu.CompilerParams(
            dimension_semantics=("parallel",),
            vmem_limit_bytes=vmem_bytes),
        cost_estimate=cost,
    )(x, w_t, b)


def init_head_params(key):
    """Deterministic init matching nn.Linear(1024, 2) shapes.
    PyTorch default: U(-1/sqrt(fan_in), 1/sqrt(fan_in))."""
    kw, kb = jax.random.split(key)
    bound = 1.0 / np.sqrt(float(F_IN))
    w = jax.random.uniform(kw, (C_OUT, F_IN), jnp.float32, -bound, bound)
    b = jax.random.uniform(kb, (C_OUT,), jnp.float32, -bound, bound)
    return w.T, b.reshape(1, C_OUT)   # store transposed for x @ W


def _reference(x, w_t, b):
    # float64 numpy reference of the exact module math: softmax(x @ W^T + b).
    xf = np.asarray(x, np.float64)
    wf = np.asarray(w_t, np.float64)
    bf = np.asarray(b, np.float64).reshape(1, C_OUT)
    logits = xf @ wf + bf
    e = np.exp(logits - logits.max(axis=1, keepdims=True))
    return e / e.sum(axis=1, keepdims=True)


if __name__ == "__main__":
    key = jax.random.PRNGKey(0)
    k_p, k_x1, k_x2 = jax.random.split(key, 3)
    w_t, b = init_head_params(k_p)

    # Case 1: small batch of pooled 1024-d features (what swin_b's trunk feeds
    # into .head).  Case 2: batch not a multiple of the tile (partial block).
    for k, B in ((k_x1, 8), (k_x2, 50)):
        x = jax.random.normal(k, (B, F_IN), jnp.float32)
        out = jax.block_until_ready(swin_binary_head(x, w_t, b))
        ref = _reference(x, w_t, b)
        assert out.shape == (B, C_OUT)
        # Tolerance covers default-precision f32 MXU matmul + EUP approx rcp.
        assert np.allclose(np.asarray(out), ref, atol=5e-3), \
            float(np.abs(np.asarray(out) - ref).max())
        assert np.allclose(np.asarray(out).sum(axis=1), 1.0, atol=1e-5)

    print("KERNEL_OK")
</pallas_src>

<mosaic_0001>
module attributes {stable_mosaic.version = 11 : i64} {
  func.func @_head_kernel(%arg0: i32, %arg1: memref<16x1024xf32, #tpu.memory_space<vmem>>, %arg2: memref<1024x2xf32, #tpu.memory_space<vmem>>, %arg3: memref<1x2xf32, #tpu.memory_space<vmem>>, %arg4: memref<16x2xf32, #tpu.memory_space<vmem>>) attributes {dimension_semantics = [#tpu.dimension_semantics<parallel>], iteration_bounds = array<i64: 1>, scalar_prefetch = 0 : i64, scratch_operands = 0 : i64, tpu.core_type = #tpu.core_type<tc>, window_params = [{transform_indices = @transform_0, window_bounds = array<i64: 16, 1024>}, {pipeline_mode = #tpu.pipeline_mode<synchronous>, transform_indices = @transform_1, window_bounds = array<i64: 1024, 2>}, {pipeline_mode = #tpu.pipeline_mode<synchronous>, transform_indices = @transform_2, window_bounds = array<i64: 1, 2>}, {transform_indices = @transform_3, window_bounds = array<i64: 16, 2>}]} {
    %c0 = arith.constant 0 : index
    %c0_0 = arith.constant 0 : index
    %0 = vector.load %arg1[%c0, %c0_0] : memref<16x1024xf32, #tpu.memory_space<vmem>>, vector<16x1024xf32>
    %c0_1 = arith.constant 0 : index
    %c0_2 = arith.constant 0 : index
    %1 = vector.load %arg2[%c0_1, %c0_2] : memref<1024x2xf32, #tpu.memory_space<vmem>>, vector<1024x2xf32>
    %cst = arith.constant dense<0.000000e+00> : vector<16x2xf32>
    %2 = tpu.matmul %0, %1, %cst {dimension_numbers = #tpu.dot_dimension_numbers<[1], [0], [0], [1], [0, 0, 1, 1], [], []>} : vector<16x1024xf32>, vector<1024x2xf32>, vector<16x2xf32> -> vector<16x2xf32>
    %c0_3 = arith.constant 0 : index
    %c0_4 = arith.constant 0 : index
    %3 = vector.load %arg3[%c0_3, %c0_4] : memref<1x2xf32, #tpu.memory_space<vmem>>, vector<1x2xf32>
    %4 = vector.broadcast %3 : vector<1x2xf32> to vector<16x2xf32>
    %5 = arith.addf %2, %4 : vector<16x2xf32>
    %6 = vector.extract_strided_slice %5 {offsets = [0, 1], sizes = [16, 1], strides = [1, 1]} : vector<16x2xf32> to vector<16x1xf32>
    %7 = vector.extract_strided_slice %5 {offsets = [0, 0], sizes = [16, 1], strides = [1, 1]} : vector<16x2xf32> to vector<16x1xf32>
    %8 = arith.subf %6, %7 : vector<16x1xf32>
    %cst_5 = arith.constant 0.000000e+00 : f32
    %9 = vector.broadcast %cst_5 : f32 to vector<16x1xf32>
    %10 = arith.subf %9, %8 : vector<16x1xf32>
    %11 = math.exp %10 : vector<16x1xf32>
    %cst_6 = arith.constant 1.000000e+00 : f32
    %12 = vector.broadcast %cst_6 : f32 to vector<16x1xf32>
    %13 = arith.addf %12, %11 : vector<16x1xf32>
    %14 = tpu.reciprocal %13 {approx = true} : vector<16x1xf32> -> vector<16x1xf32>
    %cst_7 = arith.constant 1.000000e+00 : f32
    %15 = vector.broadcast %cst_7 : f32 to vector<16x1xf32>
    %16 = arith.subf %15, %14 : vector<16x1xf32>
    %c0_8 = arith.constant 0 : index
    %c0_9 = arith.constant 0 : index
    %17 = vector.load %arg4[%c0_8, %c0_9] : memref<16x2xf32, #tpu.memory_space<vmem>>, vector<16x1xf32>
    tpu.vector_store %arg4[%c0_8, %c0_9], %16 {strides = array<i32>} : memref<16x2xf32, #tpu.memory_space<vmem>>, vector<16x1xf32>,
    %c0_10 = arith.constant 0 : index
    %c1 = arith.constant 1 : index
    %18 = vector.load %arg4[%c0_10, %c1] : memref<16x2xf32, #tpu.memory_space<vmem>>, vector<16x1xf32>
    tpu.vector_store %arg4[%c0_10, %c1], %14 {strides = array<i32>} : memref<16x2xf32, #tpu.memory_space<vmem>>, vector<16x1xf32>,
    return
  }
  func.func @transform_0(%arg0: i32) -> (i32, i32) {
    %c0_i32 = arith.constant 0 : i32
    %c0_i32_0 = arith.constant 0 : i32
    return %arg0, %c0_i32 : i32, i32
  }
  func.func @transform_1(%arg0: i32) -> (i32, i32) {
    %c0_i32 = arith.constant 0 : i32
    %c0_i32_0 = arith.constant 0 : i32
    %c0_i32_1 = arith.constant 0 : i32
    return %c0_i32, %c0_i32_0 : i32, i32
  }
  func.func @transform_2(%arg0: i32) -> (i32, i32) {
    %c0_i32 = arith.constant 0 : i32
    %c0_i32_0 = arith.constant 0 : i32
    %c0_i32_1 = arith.constant 0 : i32
    return %c0_i32, %c0_i32_0 : i32, i32
  }
  func.func @transform_3(%arg0: i32) -> (i32, i32) {
    %c0_i32 = arith.constant 0 : i32
    %c0_i32_0 = arith.constant 0 : i32
    return %arg0, %c0_i32 : i32, i32
  }
}

</mosaic_0001>

<llo_original>
// kernel: swin_binary_head.1
$region0: #{swin_binary_head.1}
  #allocation0 [shape = 'u32[]', space=smem, size = 0x4, offset = 0x4, fixed_abs, tag = 'smem constant byte address 0x4 - core index']
  #allocation1 [shape = 'u32[144,128]{1,0:T(1,128)}', space=vmem, size = 0x12000, scoped, tag = 'internal scratch']
  %s0 = inlined_call_operand.vmem [shape: f32[8,1024], index: 0, kind: input, shape index: {}]
  %s1 = inlined_call_operand.vmem [shape: f32[1024,2], index: 1, kind: input, shape index: {}]
  %s2 = inlined_call_operand.vmem [shape: f32[1,2], index: 2, kind: input, shape index: {}]
  %s3 = inlined_call_operand.vmem [shape: f32[8,2], index: 3, kind: output, shape index: {}]
  %s4 = sld [smem:[#allocation0]]
  $region56: #{swin_binary_head.1} parent=0
    _
  %s6 = ssub.s32 1, %s4
  %s7 = scalar_select 0, %s6, %s4
  $region1: #{swin_binary_head.1} parent=0
    #allocation2 [shape = 'u8[8192]{0}', space=vmem, size = 0x2000, scoped, tag = 'output window, operand 0, single buffered']
    // Predicated region
    $region2: #{swin_binary_head.1} parent=1 // pred_check
      _
    $region3: #{swin_binary_head.1} parent=1 // pred_check_branch
      %9 = sbr.rel (0) target = $region5
    $region4: #{swin_binary_head.1} parent=1 // pred_region
      _
    $region5: #{swin_binary_head.1} parent=1 // pred_fallthru
      _
    // Predicated region
    $region6: #{swin_binary_head.1} parent=1 // pred_check
      _
    $region7: #{swin_binary_head.1} parent=1 // pred_check_branch
      %11 = sbr.rel (0) target = $region9
    $region8: #{swin_binary_head.1} parent=1 // pred_region
      _
    $region9: #{swin_binary_head.1} parent=1 // pred_fallthru
      _
    // Predicated region
    $region10: #{swin_binary_head.1} parent=1 // pred_check
      _
    $region11: #{swin_binary_head.1} parent=1 // pred_check_branch
      %13 = sbr.rel (0) target = $region13
    $region12: #{swin_binary_head.1} parent=1 // pred_region
      _
    $region13: #{swin_binary_head.1} parent=1 // pred_fallthru
      _
    %v14 = vld [vmem:[%s0] sm:$0xff]
    %v15 = vld [vmem:[%s0 + $0x8] sm:$0xff]
    %v16 = vld [vmem:[%s0 + $0x10] sm:$0xff]
    %v17 = vld [vmem:[%s0 + $0x18] sm:$0xff]
    %v18 = vld [vmem:[%s0 + $0x20] sm:$0xff]
    %v19 = vld [vmem:[%s0 + $0x28] sm:$0xff]
    %v20 = vld [vmem:[%s0 + $0x30] sm:$0xff]
    %v21 = vld [vmem:[%s0 + $0x38] sm:$0xff]
    %v22 = vld [vmem:[%s0 + $0x40] sm:$0xff]
    %v23 = vld [vmem:[%s0 + $0x48] sm:$0xff]
    %v24 = vld [vmem:[%s0 + $0x50] sm:$0xff]
    %v25 = vld [vmem:[%s0 + $0x58] sm:$0xff]
    %v26 = vld [vmem:[%s0 + $0x60] sm:$0xff]
    %v27 = vld [vmem:[%s0 + $0x68] sm:$0xff]
    %v28 = vld [vmem:[%s0 + $0x70] sm:$0xff]
    %v29 = vld [vmem:[%s0 + $0x78] sm:$0xff]
    %v30 = vld [vmem:[%s1] sm:$0xff]
    %v31 = vld [vmem:[%s1 + $0x8] sm:$0xff]
    %v32 = vld [vmem:[%s1 + $0x10] sm:$0xff]
    %v33 = vld [vmem:[%s1 + $0x18] sm:$0xff]
    %v34 = vld [vmem:[%s1 + $0x20] sm:$0xff]
    %v35 = vld [vmem:[%s1 + $0x28] sm:$0xff]
    %v36 = vld [vmem:[%s1 + $0x30] sm:$0xff]
    %v37 = vld [vmem:[%s1 + $0x38] sm:$0xff]
    %v38 = vld [vmem:[%s1 + $0x40] sm:$0xff]
    %v39 = vld [vmem:[%s1 + $0x48] sm:$0xff]
    %v40 = vld [vmem:[%s1 + $0x50] sm:$0xff]
    %v41 = vld [vmem:[%s1 + $0x58] sm:$0xff]
    %v42 = vld [vmem:[%s1 + $0x60] sm:$0xff]
    %v43 = vld [vmem:[%s1 + $0x68] sm:$0xff]
    %v44 = vld [vmem:[%s1 + $0x70] sm:$0xff]
    %v45 = vld [vmem:[%s1 + $0x78] sm:$0xff]
    %v46 = vld [vmem:[%s1 + $0x80] sm:$0xff]
    %v47 = vld [vmem:[%s1 + $0x88] sm:$0xff]
    %v48 = vld [vmem:[%s1 + $0x90] sm:$0xff]
    %v49 = vld [vmem:[%s1 + $0x98] sm:$0xff]
    %v50 = vld [vmem:[%s1 + $0xa0] sm:$0xff]
    %v51 = vld [vmem:[%s1 + $0xa8] sm:$0xff]
    %v52 = vld [vmem:[%s1 + $0xb0] sm:$0xff]
    %v53 = vld [vmem:[%s1 + $0xb8] sm:$0xff]
    %v54 = vld [vmem:[%s1 + $0xc0] sm:$0xff]
    %v55 = vld [vmem:[%s1 + $0xc8] sm:$0xff]
    %v56 = vld [vmem:[%s1 + $0xd0] sm:$0xff]
    %v57 = vld [vmem:[%s1 + $0xd8] sm:$0xff]
    %v58 = vld [vmem:[%s1 + $0xe0] sm:$0xff]
    %v59 = vld [vmem:[%s1 + $0xe8] sm:$0xff]
    %v60 = vld [vmem:[%s1 + $0xf0] sm:$0xff]
    %v61 = vld [vmem:[%s1 + $0xf8] sm:$0xff]
    %v62 = vld [vmem:[%s1 + $0x100] sm:$0xff]
    %v63 = vld [vmem:[%s1 + $0x108] sm:$0xff]
    %v64 = vld [vmem:[%s1 + $0x110] sm:$0xff]
    %v65 = vld [vmem:[%s1 + $0x118] sm:$0xff]
    %v66 = vld [vmem:[%s1 + $0x120] sm:$0xff]
    %v67 = vld [vmem:[%s1 + $0x128] sm:$0xff]
    %v68 = vld [vmem:[%s1 + $0x130] sm:$0xff]
    %v69 = vld [vmem:[%s1 + $0x138] sm:$0xff]
    %v70 = vld [vmem:[%s1 + $0x140] sm:$0xff]
    %v71 = vld [vmem:[%s1 + $0x148] sm:$0xff]
    %v72 = vld [vmem:[%s1 + $0x150] sm:$0xff]
    %v73 = vld [vmem:[%s1 + $0x158] sm:$0xff]
    %v74 = vld [vmem:[%s1 + $0x160] sm:$0xff]
    %v75 = vld [vmem:[%s1 + $0x168] sm:$0xff]
    %v76 = vld [vmem:[%s1 + $0x170] sm:$0xff]
    %v77 = vld [vmem:[%s1 + $0x178] sm:$0xff]
    %v78 = vld [vmem:[%s1 + $0x180] sm:$0xff]
    %v79 = vld [vmem:[%s1 + $0x188] sm:$0xff]
    %v80 = vld [vmem:[%s1 + $0x190] sm:$0xff]
    %v81 = vld [vmem:[%s1 + $0x198] sm:$0xff]
    %v82 = vld [vmem:[%s1 + $0x1a0] sm:$0xff]
    %v83 = vld [vmem:[%s1 + $0x1a8] sm:$0xff]
    %v84 = vld [vmem:[%s1 + $0x1b0] sm:$0xff]
    %v85 = vld [vmem:[%s1 + $0x1b8] sm:$0xff]
    %v86 = vld [vmem:[%s1 + $0x1c0] sm:$0xff]
    %v87 = vld [vmem:[%s1 + $0x1c8] sm:$0xff]
    %v88 = vld [vmem:[%s1 + $0x1d0] sm:$0xff]
    %v89 = vld [vmem:[%s1 + $0x1d8] sm:$0xff]
    %v90 = vld [vmem:[%s1 + $0x1e0] sm:$0xff]
    %v91 = vld [vmem:[%s1 + $0x1e8] sm:$0xff]
    %v92 = vld [vmem:[%s1 + $0x1f0] sm:$0xff]
    %v93 = vld [vmem:[%s1 + $0x1f8] sm:$0xff]
    %v94 = vld [vmem:[%s1 + $0x200] sm:$0xff]
    %v95 = vld [vmem:[%s1 + $0x208] sm:$0xff]
    %v96 = vld [vmem:[%s1 + $0x210] sm:$0xff]
    %v97 = vld [vmem:[%s1 + $0x218] sm:$0xff]
    %v98 = vld [vmem:[%s1 + $0x220] sm:$0xff]
    %v99 = vld [vmem:[%s1 + $0x228] sm:$0xff]
    %v100 = vld [vmem:[%s1 + $0x230] sm:$0xff]
    %v101 = vld [vmem:[%s1 + $0x238] sm:$0xff]
    %v102 = vld [vmem:[%s1 + $0x240] sm:$0xff]
    %v103 = vld [vmem:[%s1 + $0x248] sm:$0xff]
    %v104 = vld [vmem:[%s1 + $0x250] sm:$0xff]
    %v105 = vld [vmem:[%s1 + $0x258] sm:$0xff]
    %v106 = vld [vmem:[%s1 + $0x260] sm:$0xff]
    %v107 = vld [vmem:[%s1 + $0x268] sm:$0xff]
    %v108 = vld [vmem:[%s1 + $0x270] sm:$0xff]
    %v109 = vld [vmem:[%s1 + $0x278] sm:$0xff]
    %v110 = vld [vmem:[%s1 + $0x280] sm:$0xff]
    %v111 = vld [vmem:[%s1 + $0x288] sm:$0xff]
    %v112 = vld [vmem:[%s1 + $0x290] sm:$0xff]
    %v113 = vld [vmem:[%s1 + $0x298] sm:$0xff]
    %v114 = vld [vmem:[%s1 + $0x2a0] sm:$0xff]
    %v115 = vld [vmem:[%s1 + $0x2a8] sm:$0xff]
    %v116 = vld [vmem:[%s1 + $0x2b0] sm:$0xff]
    %v117 = vld [vmem:[%s1 + $0x2b8] sm:$0xff]
    %v118 = vld [vmem:[%s1 + $0x2c0] sm:$0xff]
    %v119 = vld [vmem:[%s1 + $0x2c8] sm:$0xff]
    %v120 = vld [vmem:[%s1 + $0x2d0] sm:$0xff]
    %v121 = vld [vmem:[%s1 + $0x2d8] sm:$0xff]
    %v122 = vld [vmem:[%s1 + $0x2e0] sm:$0xff]
    %v123 = vld [vmem:[%s1 + $0x2e8] sm:$0xff]
    %v124 = vld [vmem:[%s1 + $0x2f0] sm:$0xff]
    %v125 = vld [vmem:[%s1 + $0x2f8] sm:$0xff]
    %v126 = vld [vmem:[%s1 + $0x300] sm:$0xff]
    %v127 = vld [vmem:[%s1 + $0x308] sm:$0xff]
    %v128 = vld [vmem:[%s1 + $0x310] sm:$0xff]
    %v129 = vld [vmem:[%s1 + $0x318] sm:$0xff]
    %v130 = vld [vmem:[%s1 + $0x320] sm:$0xff]
    %v131 = vld [vmem:[%s1 + $0x328] sm:$0xff]
    %v132 = vld [vmem:[%s1 + $0x330] sm:$0xff]
    %v133 = vld [vmem:[%s1 + $0x338] sm:$0xff]
    %v134 = vld [vmem:[%s1 + $0x340] sm:$0xff]
    %v135 = vld [vmem:[%s1 + $0x348] sm:$0xff]
    %v136 = vld [vmem:[%s1 + $0x350] sm:$0xff]
    %v137 = vld [vmem:[%s1 + $0x358] sm:$0xff]
    %v138 = vld [vmem:[%s1 + $0x360] sm:$0xff]
    %v139 = vld [vmem:[%s1 + $0x368] sm:$0xff]
    %v140 = vld [vmem:[%s1 + $0x370] sm:$0xff]
    %v141 = vld [vmem:[%s1 + $0x378] sm:$0xff]
    %v142 = vld [vmem:[%s1 + $0x380] sm:$0xff]
    %v143 = vld [vmem:[%s1 + $0x388] sm:$0xff]
    %v144 = vld [vmem:[%s1 + $0x390] sm:$0xff]
    %v145 = vld [vmem:[%s1 + $0x398] sm:$0xff]
    %v146 = vld [vmem:[%s1 + $0x3a0] sm:$0xff]
    %v147 = vld [vmem:[%s1 + $0x3a8] sm:$0xff]
    %v148 = vld [vmem:[%s1 + $0x3b0] sm:$0xff]
    %v149 = vld [vmem:[%s1 + $0x3b8] sm:$0xff]
    %v150 = vld [vmem:[%s1 + $0x3c0] sm:$0xff]
    %v151 = vld [vmem:[%s1 + $0x3c8] sm:$0xff]
    %v152 = vld [vmem:[%s1 + $0x3d0] sm:$0xff]
    %v153 = vld [vmem:[%s1 + $0x3d8] sm:$0xff]
    %v154 = vld [vmem:[%s1 + $0x3e0] sm:$0xff]
    %v155 = vld [vmem:[%s1 + $0x3e8] sm:$0xff]
    %v156 = vld [vmem:[%s1 + $0x3f0] sm:$0xff]
    %v157 = vld [vmem:[%s1 + $0x3f8] sm:$0xff]
    %v158 = vld [vmem:[%s2] sm:$0x1]
    %v160 = vlaneseq
    %v161 = vshrl.u32 %v160, 7
    %v162 = vsub.s32 0, %v161
    %v163 = vrot.slane %v158, %v162
    %165 = vmatprep.subr.mxu0 0.0
    %166 = vmatpush1.msra.mxu0 %v30
    %167 = vmatprep.subr.mxu0 0.0
    %168 = vmatpush1.msra.mxu0 %v31
    %169 = vmatprep.subr.mxu0 0.0
    %170 = vmatpush1.msra.mxu0 %v32
    %171 = vmatprep.subr.mxu0 0.0
    %172 = vmatpush1.msra.mxu0 %v33
    %173 = vmatprep.subr.mxu0 0.0
    %174 = vmatpush1.msra.mxu0 %v34
    %175 = vmatprep.subr.mxu0 0.0
    %176 = vmatpush1.msra.mxu0 %v35
    %177 = vmatprep.subr.mxu0 0.0
    %178 = vmatpush1.msra.mxu0 %v36
    %179 = vmatprep.subr.mxu0 0.0
    %180 = vmatpush1.msra.mxu0 %v37
    %181 = vmatprep.subr.mxu0 0.0
    %182 = vmatpush1.msra.mxu0 %v38
    %183 = vmatprep.subr.mxu0 0.0
    %184 = vmatpush1.msra.mxu0 %v39
    %185 = vmatprep.subr.mxu0 0.0
    %186 = vmatpush1.msra.mxu0 %v40
    %187 = vmatprep.subr.mxu0 0.0
    %188 = vmatpush1.msra.mxu0 %v41
    %189 = vmatprep.subr.mxu0 0.0
    %190 = vmatpush1.msra.mxu0 %v42
    %191 = vmatprep.subr.mxu0 0.0
    %192 = vmatpush1.msra.mxu0 %v43
    %193 = vmatprep.subr.mxu0 0.0
    %194 = vmatpush1.msra.mxu0 %v44
    %195 = vmatprep.subr.mxu0 0.0
    %196 = vmatpush1.msra.mxu0 %v45
    %197 = vmatprep.subr.mxu0 0.0
    %198 = vmatpush1.msra.mxu0 %v46
    %199 = vmatprep.subr.mxu0 0.0
    %200 = vmatpush1.msra.mxu0 %v47
    %201 = vmatprep.subr.mxu0 0.0
    %202 = vmatpush1.msra.mxu0 %v48
    %203 = vmatprep.subr.mxu0 0.0
    %204 = vmatpush1.msra.mxu0 %v49
    %205 = vmatprep.subr.mxu0 0.0
    %206 = vmatpush1.msra.mxu0 %v50
    %207 = vmatprep.subr.mxu0 0.0
    %208 = vmatpush1.msra.mxu0 %v51
    %209 = vmatprep.subr.mxu0 0.0
    %210 = vmatpush1.msra.mxu0 %v52
    %211 = vmatprep.subr.mxu0 0.0
    %212 = vmatpush1.msra.mxu0 %v53
    %213 = vmatprep.subr.mxu0 0.0
    %214 = vmatpush1.msra.mxu0 %v54
    %215 = vmatprep.subr.mxu0 0.0
    %216 = vmatpush1.msra.mxu0 %v55
    %217 = vmatprep.subr.mxu0 0.0
    %218 = vmatpush1.msra.mxu0 %v56
    %219 = vmatprep.subr.mxu0 0.0
    %220 = vmatpush1.msra.mxu0 %v57
    %221 = vmatprep.subr.mxu0 0.0
    %222 = vmatpush1.msra.mxu0 %v58
    %223 = vmatprep.subr.mxu0 0.0
    %224 = vmatpush1.msra.mxu0 %v59
    %225 = vmatprep.subr.mxu0 0.0
    %226 = vmatpush1.msra.mxu0 %v60
    %227 = vmatprep.subr.mxu0 0.0
    %228 = vmatpush1.msra.mxu0 %v61
    %229 = vmatprep.mubr.f32.mxu0 %v15
    %230 = vmatmul.mubr.f32.gmra.mrb[0].mxu0 %v14
    %v231 = vpop.f32.mrb[0].mxu0
    %v232 = vadd.f32 %v163, %v231
    %v233 = vpop.f32.mrb[0].mxu0
    %234 = vmatprep.mubr.f32.mxu0 %v23
    %235 = vmatmul.mubr.f32.gmra.mrb[0].mxu0 %v22
    %v236 = vpop.f32.mrb[0].mxu0
    %v237 = vadd.f32 %v163, %v236
    %v238 = vpop.f32.mrb[0].mxu0
    %239 = vdwg.mxu0
    %240 = vmatprep.subr.mxu0 0.0
    %241 = vmatpush1.msra.mxu0 %v62
    %242 = vmatprep.subr.mxu0 0.0
    %243 = vmatpush1.msra.mxu0 %v63
    %244 = vmatprep.subr.mxu0 0.0
    %245 = vmatpush1.msra.mxu0 %v64
    %246 = vmatprep.subr.mxu0 0.0
    %247 = vmatpush1.msra.mxu0 %v65
    %248 = vmatprep.subr.mxu0 0.0
    %249 = vmatpush1.msra.mxu0 %v66
    %250 = vmatprep.subr.mxu0 0.0
    %251 = vmatpush1.msra.mxu0 %v67
    %252 = vmatprep.subr.mxu0 0.0
    %253 = vmatpush1.msra.mxu0 %v68
    %254 = vmatprep.subr.mxu0 0.0
    %255 = vmatpush1.msra.mxu0 %v69
    %256 = vmatprep.subr.mxu0 0.0
    %257 = vmatpush1.msra.mxu0 %v70
    %258 = vmatprep.subr.mxu0 0.0
    %259 = vmatpush1.msra.mxu0 %v71
    %260 = vmatprep.subr.mxu0 0.0
    %261 = vmatpush1.msra.mxu0 %v72
    %262 = vmatprep.subr.mxu0 0.0
    %263 = vmatpush1.msra.mxu0 %v73
    %264 = vmatprep.subr.mxu0 0.0
    %265 = vmatpush1.msra.mxu0 %v74
    %266 = vmatprep.subr.mxu0 0.0
    %267 = vmatpush1.msra.mxu0 %v75
    %268 = vmatprep.subr.mxu0 0.0
    %269 = vmatpush1.msra.mxu0 %v76
    %270 = vmatprep.subr.mxu0 0.0
    %271 = vmatpush1.msra.mxu0 %v77
    %272 = vmatprep.subr.mxu0 0.0
    %273 = vmatpush1.msra.mxu0 %v78
    %274 = vmatprep.subr.mxu0 0.0
    %275 = vmatpush1.msra.mxu0 %v79
    %276 = vmatprep.subr.mxu0 0.0
    %277 = vmatpush1.msra.mxu0 %v80
    %278 = vmatprep.subr.mxu0 0.0
    %279 = vmatpush1.msra.mxu0 %v81
    %280 = vmatprep.subr.mxu0 0.0
    %281 = vmatpush1.msra.mxu0 %v82
    %282 = vmatprep.subr.mxu0 0.0
    %283 = vmatpush1.msra.mxu0 %v83
    %284 = vmatprep.subr.mxu0 0.0
    %285 = vmatpush1.msra.mxu0 %v84
    %286 = vmatprep.subr.mxu0 0.0
    %287 = vmatpush1.msra.mxu0 %v85
    %288 = vmatprep.subr.mxu0 0.0
    %289 = vmatpush1.msra.mxu0 %v86
    %290 = vmatprep.subr.mxu0 0.0
    %291 = vmatpush1.msra.mxu0 %v87
    %292 = vmatprep.subr.mxu0 0.0
    %293 = vmatpush1.msra.mxu0 %v88
    %294 = vmatprep.subr.mxu0 0.0
    %295 = vmatpush1.msra.mxu0 %v89
    %296 = vmatprep.subr.mxu0 0.0
    %297 = vmatpush1.msra.mxu0 %v90
    %298 = vmatprep.subr.mxu0 0.0
    %299 = vmatpush1.msra.mxu0 %v91
    %300 = vmatprep.subr.mxu0 0.0
    %301 = vmatpush1.msra.mxu0 %v92
    %302 = vmatprep.subr.mxu0 0.0
    %303 = vmatpush1.msra.mxu0 %v93
    %304 = vmatprep.mubr.f32.mxu0 %v17
    %305 = vmatmul.mubr.f32.gmra.mrb[0].mxu0 %v16
    %v306 = vpop.f32.mrb[0].mxu0
    %v307 = vadd.f32 %v232, %v306
    %v308 = vpop.f32.mrb[0].mxu0
    %309 = vmatprep.mubr.f32.mxu0 %v25
    %310 = vmatmul.mubr.f32.gmra.mrb[0].mxu0 %v24
    %v311 = vpop.f32.mrb[0].mxu0
    %v312 = vadd.f32 %v237, %v311
    %v313 = vpop.f32.mrb[0].mxu0
    %314 = vdwg.mxu0
    %315 = vmatprep.subr.mxu0 0.0
    %316 = vmatpush1.msra.mxu0 %v94
    %317 = vmatprep.subr.mxu0 0.0
    %318 = vmatpush1.msra.mxu0 %v95
    %319 = vmatprep.subr.mxu0 0.0
    %320 = vmatpush1.msra.mxu0 %v96
    %321 = vmatprep.subr.mxu0 0.0
    %322 = vmatpush1.msra.mxu0 %v97
    %323 = vmatprep.subr.mxu0 0.0
    %324 = vmatpush1.msra.mxu0 %v98
    %325 = vmatprep.subr.mxu0 0.0
    %326 = vmatpush1.msra.mxu0 %v99
    %327 = vmatprep.subr.mxu0 0.0
    %328 = vmatpush1.msra.mxu0 %v100
    %329 = vmatprep.subr.mxu0 0.0
    %330 = vmatpush1.msra.mxu0 %v101
    %331 = vmatprep.subr.mxu0 0.0
    %332 = vmatpush1.msra.mxu0 %v102
    %333 = vmatprep.subr.mxu0 0.0
    %334 = vmatpush1.msra.mxu0 %v103
    %335 = vmatprep.subr.mxu0 0.0
    %336 = vmatpush1.msra.mxu0 %v104
    %337 = vmatprep.subr.mxu0 0.0
    %338 = vmatpush1.msra.mxu0 %v105
    %339 = vmatprep.subr.mxu0 0.0
    %340 = vmatpush1.msra.mxu0 %v106
    %341 = vmatprep.subr.mxu0 0.0
    %342 = vmatpush1.msra.mxu0 %v107
    %343 = vmatprep.subr.mxu0 0.0
    %344 = vmatpush1.msra.mxu0 %v108
    %345 = vmatprep.subr.mxu0 0.0
    %346 = vmatpush1.msra.mxu0 %v109
    %347 = vmatprep.subr.mxu0 0.0
    %348 = vmatpush1.msra.mxu0 %v110
    %349 = vmatprep.subr.mxu0 0.0
    %350 = vmatpush1.msra.mxu0 %v111
    %351 = vmatprep.subr.mxu0 0.0
    %352 = vmatpush1.msra.mxu0 %v112
    %353 = vmatprep.subr.mxu0 0.0
    %354 = vmatpush1.msra.mxu0 %v113
    %355 = vmatprep.subr.mxu0 0.0
    %356 = vmatpush1.msra.mxu0 %v114
    %357 = vmatprep.subr.mxu0 0.0
    %358 = vmatpush1.msra.mxu0 %v115
    %359 = vmatprep.subr.mxu0 0.0
    %360 = vmatpush1.msra.mxu0 %v116
    %361 = vmatprep.subr.mxu0 0.0
    %362 = vmatpush1.msra.mxu0 %v117
    %363 = vmatprep.subr.mxu0 0.0
    %364 = vmatpush1.msra.mxu0 %v118
    %365 = vmatprep.subr.mxu0 0.0
    %366 = vmatpush1.msra.mxu0 %v119
    %367 = vmatprep.subr.mxu0 0.0
    %368 = vmatpush1.msra.mxu0 %v120
    %369 = vmatprep.subr.mxu0 0.0
    %370 = vmatpush1.msra.mxu0 %v121
    %371 = vmatprep.subr.mxu0 0.0
    %372 = vmatpush1.msra.mxu0 %v122
    %373 = vmatprep.subr.mxu0 0.0
    %374 = vmatpush1.msra.mxu0 %v123
    %375 = vmatprep.subr.mxu0 0.0
    %376 = vmatpush1.msra.mxu0 %v124
    %377 = vmatprep.subr.mxu0 0.0
    %378 = vmatpush1.msra.mxu0 %v125
    %379 = vmatprep.mubr.f32.mxu0 %v19
    %380 = vmatmul.mubr.f32.gmra.mrb[0].mxu0 %v18
    %v381 = vpop.f32.mrb[0].mxu0
    %v382 = vadd.f32 %v307, %v381
    %v383 = vpop.f32.mrb[0].mxu0
    %384 = vmatprep.mubr.f32.mxu0 %v27
    %385 = vmatmul.mubr.f32.gmra.mrb[0].mxu0 %v26
    %v386 = vpop.f32.mrb[0].mxu0
    %v387 = vadd.f32 %v312, %v386
    %v388 = vpop.f32.mrb[0].mxu0
    %389 = vdwg.mxu0
    %390 = vmatprep.subr.mxu0 0.0
    %391 = vmatpush1.msra.mxu0 %v126
    %392 = vmatprep.subr.mxu0 0.0
    %393 = vmatpush1.msra.mxu0 %v127
    %394 = vmatprep.subr.mxu0 0.0
    %395 = vmatpush1.msra.mxu0 %v128
    %396 = vmatprep.subr.mxu0 0.0
    %397 = vmatpush1.msra.mxu0 %v129
    %398 = vmatprep.subr.mxu0 0.0
    %399 = vmatpush1.msra.mxu0 %v130
    %400 = vmatprep.subr.mxu0 0.0
    %401 = vmatpush1.msra.mxu0 %v131
    %402 = vmatprep.subr.mxu0 0.0
    %403 = vmatpush1.msra.mxu0 %v132
    %404 = vmatprep.subr.mxu0 0.0
    %405 = vmatpush1.msra.mxu0 %v133
    %406 = vmatprep.subr.mxu0 0.0
    %407 = vmatpush1.msra.mxu0 %v134
    %408 = vmatprep.subr.mxu0 0.0
    %409 = vmatpush1.msra.mxu0 %v135
    %410 = vmatprep.subr.mxu0 0.0
    %411 = vmatpush1.msra.mxu0 %v136
    %412 = vmatprep.subr.mxu0 0.0
    %413 = vmatpush1.msra.mxu0 %v137
    %414 = vmatprep.subr.mxu0 0.0
    %415 = vmatpush1.msra.mxu0 %v138
    %416 = vmatprep.subr.mxu0 0.0
    %417 = vmatpush1.msra.mxu0 %v139
    %418 = vmatprep.subr.mxu0 0.0
    %419 = vmatpush1.msra.mxu0 %v140
    %420 = vmatprep.subr.mxu0 0.0
    %421 = vmatpush1.msra.mxu0 %v141
    %422 = vmatprep.subr.mxu0 0.0
    %423 = vmatpush1.msra.mxu0 %v142
    %424 = vmatprep.subr.mxu0 0.0
    %425 = vmatpush1.msra.mxu0 %v143
    %426 = vmatprep.subr.mxu0 0.0
    %427 = vmatpush1.msra.mxu0 %v144
    %428 = vmatprep.subr.mxu0 0.0
    %429 = vmatpush1.msra.mxu0 %v145
    %430 = vmatprep.subr.mxu0 0.0
    %431 = vmatpush1.msra.mxu0 %v146
    %432 = vmatprep.subr.mxu0 0.0
    %433 = vmatpush1.msra.mxu0 %v147
    %434 = vmatprep.subr.mxu0 0.0
    %435 = vmatpush1.msra.mxu0 %v148
    %436 = vmatprep.subr.mxu0 0.0
    %437 = vmatpush1.msra.mxu0 %v149
    %438 = vmatprep.subr.mxu0 0.0
    %439 = vmatpush1.msra.mxu0 %v150
    %440 = vmatprep.subr.mxu0 0.0
    %441 = vmatpush1.msra.mxu0 %v151
    %442 = vmatprep.subr.mxu0 0.0
    %443 = vmatpush1.msra.mxu0 %v152
    %444 = vmatprep.subr.mxu0 0.0
    %445 = vmatpush1.msra.mxu0 %v153
    %446 = vmatprep.subr.mxu0 0.0
    %447 = vmatpush1.msra.mxu0 %v154
    %448 = vmatprep.subr.mxu0 0.0
    %449 = vmatpush1.msra.mxu0 %v155
    %450 = vmatprep.subr.mxu0 0.0
    %451 = vmatpush1.msra.mxu0 %v156
    %452 = vmatprep.subr.mxu0 0.0
    %453 = vmatpush1.msra.mxu0 %v157
    %454 = vmatprep.mubr.f32.mxu0 %v21
    %455 = vmatmul.mubr.f32.gmra.mrb[0].mxu0 %v20
    %v456 = vpop.f32.mrb[0].mxu0
    %v457 = vadd.f32 %v382, %v456
    %v458 = vpop.f32.mrb[0].mxu0
    %459 = vmatprep.mubr.f32.mxu0 %v29
    %460 = vmatmul.mubr.f32.gmra.mrb[0].mxu0 %v28
    %v461 = vpop.f32.mrb[0].mxu0
    %v462 = vadd.f32 %v387, %v461
    %v463 = vpop.f32.mrb[0].mxu0
    %464 = vdwg.mxu0
    %467 = vrot.lane.b32.xlu0 %v457, 1
    %v468 = vpop.permute.xlu0 %467
    %469 = vrot.lane.b32.xlu0 %v462, 1
    %v470 = vpop.permute.xlu0 %469
    %v473 = vsub.f32 %v457, %v468
    %v474 = vsub.f32 %v462, %v470
    %v475 = vsub.f32 0.0, %v473
    %v476 = vsub.f32 0.0, %v474
    %v477 = vmul.f32 %v475, 1.442695
    %v478 = vpow.pop %v477
    %v479 = vmul.f32 %v476, 1.442695
    %v480 = vpow.pop %v479
    %v481 = vadd.f32 %v478, 1.0
    %v482 = vadd.f32 %v480, 1.0
    %v483 = vrcp.pop %v481
    %v484 = vrcp.pop %v482
    %v485 = vsub.f32 1.0, %v483
    %v486 = vsub.f32 1.0, %v484
    %489 = vrot.lane.b32.xlu0 %v485, 127
    %v490 = vpop.permute.xlu0 %489
    %491 = vrot.lane.b32.xlu0 %v486, 127
    %v492 = vpop.permute.xlu0 %491
    %vm495 = vcmask 7168
    %496 = vst.msk [vmem:[#allocation2] sm:$0xff] %vm495, %v490
    %497 = vst.msk [vmem:[#allocation2 + $0x8] sm:$0xff] %vm495, %v492
    %vm498 = vcmask 15368
    %499 = vst.msk [vmem:[#allocation2] sm:$0xff] %vm498, %v483
    %500 = vst.msk [vmem:[#allocation2 + $0x8] sm:$0xff] %vm498, %v484
    // Predicated region
    $region14: #{swin_binary_head.1} parent=1 // pred_check
      _
    $region15: #{swin_binary_head.1} parent=1 // pred_check_branch
      %502 = sbr.rel (0) target = $region17
    $region16: #{swin_binary_head.1} parent=1 // pred_region
      // Predicated region
      $region18: #{swin_binary_head.1} parent=16 // pred_check
        _
      $region19: #{swin_binary_head.1} parent=16 // pred_check_branch
        %504 = sbr.rel (0) target = $region21
      $region20: #{swin_binary_head.1} parent=16 // pred_region
        // Predicated region
        $region22: #{swin_binary_head.1} parent=20 // pred_check
          _
        $region23: #{swin_binary_head.1} parent=20 // pred_check_branch
          %506 = sbr.rel (0) target = $region25
        $region24: #{swin_binary_head.1} parent=20 // pred_region
          // Predicated region
          $region37: #{swin_binary_head.1} parent=24 // pred_check
            _
          $region38: #{swin_binary_head.1} parent=24 // pred_check_branch
            %521 = sbr.rel (0) target = $region40
          $region39: #{swin_binary_head.1} parent=24 // pred_region
            loop: start=0, step=1, limit=1
            $region41: #{swin_binary_head.1} parent=39 // loop_pre_header
              _
            $region42: #{swin_binary_head.1} parent=39 // loop_header
              %s523 = sphi 0, %s527
              %p524 = scmp.ge.s32.totalorder %s523, 1
              %s528 = sphi [#allocation2], [#allocation2]
              %s529 = sphi %s3, %s3
            $region43: #{swin_binary_head.1} parent=39 // loop_header_branch
              %526 = sbr.rel (%p524) target = $region47
            $region44: #{swin_binary_head.1} parent=39 // loop_body
              %v530 = vld [vmem:[%s528] sm:$0xff]
              %531 = vst [vmem:[%s529] sm:$0xff] %v530
            $region45: #{swin_binary_head.1} parent=39 // loop_footer
              %s527 = sadd.s32 1, %s523
            $region46: #{swin_binary_head.1} parent=39 // loop_footer_branch
              %522 = sbr.rel target = $region42
            $region47: #{swin_binary_head.1} parent=39 // loop_exit
              _
          $region40: #{swin_binary_head.1} parent=24 // pred_fallthru
            _
          // Predicated region
          $region48: #{swin_binary_head.1} parent=24 // pred_check
            _
          $region49: #{swin_binary_head.1} parent=24 // pred_check_branch
            %533 = sbr.rel target = $region51
          $region50: #{swin_binary_head.1} parent=24 // pred_region
            _
          $region51: #{swin_binary_head.1} parent=24 // pred_fallthru
            _
        $region25: #{swin_binary_head.1} parent=20 // pred_fallthru
          _
        // Predicated region
        $region26: #{swin_binary_head.1} parent=20 // pred_check
          _
        $region27: #{swin_binary_head.1} parent=20 // pred_check_branch
          %508 = sbr.rel target = $region29
        $region28: #{swin_binary_head.1} parent=20 // pred_region
          loop: start=0, step=1, limit=1
          $region30: #{swin_binary_head.1} parent=28 // loop_pre_header
            _
          $region31: #{swin_binary_head.1} parent=28 // loop_header
            %s511 = sphi 0, %s515
            %p512 = scmp.ge.s32.totalorder %s511, 1
            %s516 = sphi [#allocation2], [#allocation2]
            %s517 = sphi %s3, %s3
          $region32: #{swin_binary_head.1} parent=28 // loop_header_branch
            %514 = sbr.rel (%p512) target = $region36
          $region33: #{swin_binary_head.1} parent=28 // loop_body
            %v518 = vld [vmem:[%s516] sm:$0xff]
            %519 = vst [vmem:[%s517] sm:$0xff] %v518
          $region34: #{swin_binary_head.1} parent=28 // loop_footer
            %s515 = sadd.s32 1, %s511
          $region35: #{swin_binary_head.1} parent=28 // loop_footer_branch
            %510 = sbr.rel target = $region31
          $region36: #{swin_binary_head.1} parent=28 // loop_exit
            _
        $region29: #{swin_binary_head.1} parent=20 // pred_fallthru
          _
      $region21: #{swin_binary_head.1} parent=16 // pred_fallthru
        _
      %534 = vnop
    $region17: #{swin_binary_head.1} parent=1 // pred_fallthru
      _
    // Predicated region
    $region52: #{swin_binary_head.1} parent=1 // pred_check
      _
    $region53: #{swin_binary_head.1} parent=1 // pred_check_branch
      %536 = sbr.rel (0) target = $region55
    $region54: #{swin_binary_head.1} parent=1 // pred_region
      _
    $region55: #{swin_binary_head.1} parent=1 // pred_fallthru
      _

</llo_original>
